<compile_context>
chip_gen: v6e
topology: v6e:2x2x1
jax: 0.10.0
libtpu: 0.0.40
codegen_flags: <defaults>
</compile_context>

<pallas_src>
import jax
import jax.numpy as jnp
from jax.experimental import pallas as pl
from jax.experimental.pallas import tpu as pltpu

_COMPUTE_DTYPE = jnp.bfloat16


def _round_up(a, b):
    return (a + b - 1) // b * b


def _pick_tile(dim, max_tile):
    """Largest divisor of `dim` that is a multiple of 128 and <= max_tile."""
    cap = min(max_tile, dim)
    cap -= cap % 128
    for cand in range(cap, 127, -128):
        if dim % cand == 0:
            return cand
    return 128


# ----------------------------- fused fast path -------------------------------
def _fused_kernel(x_ref, w_enc_ref, b_enc_ref, w_dec_ref, b_dec_ref,
                  recon_ref, latent_ref):
    """Whole forward for one M tile: encode -> ReLU -> decode, all VMEM-resident."""
    z = jnp.maximum(
        jnp.dot(x_ref[...], w_enc_ref[...], preferred_element_type=jnp.float32)
        + b_enc_ref[...], 0.0)
    latent_ref[...] = z.astype(latent_ref.dtype)
    recon_ref[...] = (
        jnp.dot(z.astype(w_dec_ref.dtype), w_dec_ref[...],
                preferred_element_type=jnp.float32)
        + b_dec_ref[...]).astype(recon_ref.dtype)


# ------------------------------- tiled path -----------------------------------
def _encoder_kernel(x_ref, w_enc_ref, b_enc_ref, latent_ref, acc_ref):
    """Encoder K-reduction over grid axis 1; f32 accumulator, bf16 latent store."""
    k = pl.program_id(1)

    @pl.when(k == 0)
    def _init():
        acc_ref[...] = jnp.zeros_like(acc_ref)

    acc_ref[...] += jnp.dot(x_ref[...], w_enc_ref[...],
                            preferred_element_type=jnp.float32)

    @pl.when(k == pl.num_programs(1) - 1)
    def _finalize():
        latent_ref[...] = jnp.maximum(acc_ref[...] + b_enc_ref[...],
                                      0.0).astype(latent_ref.dtype)


def _decoder_kernel(z_ref, w_dec_ref, b_dec_ref, recon_ref):
    """One lane-dense (tm, td) reconstruction tile per grid step."""
    recon_ref[...] = (
        jnp.dot(z_ref[...], w_dec_ref[...],
                preferred_element_type=jnp.float32)
        + b_dec_ref[...]).astype(recon_ref.dtype)


# -------------------------------- wrapper -------------------------------------
def autoencoder_forward(x_nchw, w_enc, b_enc, w_dec, b_dec, *,
                        tm_max=256, tile_max=2048, force_tiled=False):
    n, c, h, w = x_nchw.shape
    d = c * h * w
    latent_dim = w_enc.shape[1]
    assert w_enc.shape == (d, latent_dim)
    assert w_dec.shape == (latent_dim, d)
    assert d % 128 == 0 and latent_dim % 128 == 0, "lane-dense dims required"

    out_dtype = x_nchw.dtype
    out_isize = jnp.dtype(out_dtype).itemsize

    # Batch tiling: multiple of 16 sublanes (bf16 packing), tm <= 256 (v6e/v7x MXU).
    tm = min(_round_up(n, 16), tm_max)
    n_pad = _round_up(n, tm)
    nm = n_pad // tm

    # Operand prep: bf16 activations/weights into the MXU, f32 biases.
    # Weights are expected to already be bf16 (no per-call wrapper cast pass).
    x2d = x_nchw.reshape(n, d).astype(_COMPUTE_DTYPE)
    if n_pad != n:
        # NOTE: padded rows produce ReLU(b_enc)/b_dec garbage; sliced off below.
        x2d = jnp.pad(x2d, ((0, n_pad - n), (0, 0)))
    w_enc_c = w_enc if w_enc.dtype == _COMPUTE_DTYPE else w_enc.astype(_COMPUTE_DTYPE)
    w_dec_c = w_dec if w_dec.dtype == _COMPUTE_DTYPE else w_dec.astype(_COMPUTE_DTYPE)
    b_enc2d = b_enc.reshape(1, latent_dim).astype(jnp.float32)
    b_dec2d = b_dec.reshape(1, d).astype(jnp.float32)

    # ---------------------------- fast path ----------------------------------
    # Per-step (double-buffered) VMEM footprint if everything is kept resident.
    fast_bytes = (2 * (tm * d * 2 + tm * d * out_isize + tm * latent_dim * out_isize)
                  + 2 * (2 * d * latent_dim * 2)
                  + (latent_dim + d) * 4)
    use_fast = (not force_tiled) and fast_bytes <= 12 * 2**20

    if use_fast:
        cost = pl.CostEstimate(
            flops=4 * n_pad * d * latent_dim,
            transcendentals=0,
            bytes_accessed=(n_pad * d * 2 + 2 * d * latent_dim * 2
                            + (latent_dim + d) * 4
                            + n_pad * d * out_isize
                            + n_pad * latent_dim * out_isize))
        recon2d, latent = pl.pallas_call(
            _fused_kernel,
            out_shape=(jax.ShapeDtypeStruct((n_pad, d), out_dtype),
                       jax.ShapeDtypeStruct((n_pad, latent_dim), out_dtype)),
            grid_spec=pltpu.PrefetchScalarGridSpec(
                num_scalar_prefetch=0,
                grid=(nm,),
                in_specs=[
                    pl.BlockSpec((tm, d), lambda m: (m, 0)),            # x
                    pl.BlockSpec((d, latent_dim), lambda m: (0, 0)),    # W_enc
                    pl.BlockSpec((1, latent_dim), lambda m: (0, 0)),    # b_enc
                    pl.BlockSpec((latent_dim, d), lambda m: (0, 0)),    # W_dec
                    pl.BlockSpec((1, d), lambda m: (0, 0)),             # b_dec
                ],
                out_specs=(pl.BlockSpec((tm, d), lambda m: (m, 0)),          # recon
                           pl.BlockSpec((tm, latent_dim), lambda m: (m, 0))  # latent
                           ),
            ),
            compiler_params=pltpu.CompilerParams(
                dimension_semantics=("parallel",),
                vmem_limit_bytes=32 * 1024 * 1024,
            ),
            cost_estimate=cost,
        )(x2d, w_enc_c, b_enc2d, w_dec_c, b_dec2d)
        recon = recon2d[:n].reshape(n, c, h, w)
        return recon, latent[:n]

    # ---------------------------- tiled path ----------------------------------
    # K / D tiles: multiples of 128, up to tile_max, re-checked against a
    # conservative VMEM budget (safe under v7x's 64 MiB physical VMEM).
    vmem_budget = 24 * 2**20
    tk = _pick_tile(d, tile_max)
    while tk > 128 and 2 * (tm * tk + tk * latent_dim) * 2 > vmem_budget:
        tk = _pick_tile(d, tk - 128)
    td = _pick_tile(d, tile_max)
    while td > 128 and 2 * (latent_dim * td * 2 + tm * td * out_isize) > vmem_budget:
        td = _pick_tile(d, td - 128)
    nk = d // tk
    nd = d // td

    # Encoder: K-reduction into an f32 accumulator; bf16 latent written once.
    latent_bf16 = pl.pallas_call(
        _encoder_kernel,
        out_shape=jax.ShapeDtypeStruct((n_pad, latent_dim), _COMPUTE_DTYPE),
        grid_spec=pltpu.PrefetchScalarGridSpec(
            num_scalar_prefetch=0,
            grid=(nm, nk),
            in_specs=[
                pl.BlockSpec((tm, tk), lambda m, k: (m, k)),             # x
                pl.BlockSpec((tk, latent_dim), lambda m, k: (k, 0)),     # W_enc
                pl.BlockSpec((1, latent_dim), lambda m, k: (0, 0)),      # b_enc
            ],
            out_specs=pl.BlockSpec((tm, latent_dim), lambda m, k: (m, 0)),
            scratch_shapes=[pltpu.VMEM((tm, latent_dim), jnp.float32)],
        ),
        compiler_params=pltpu.CompilerParams(
            dimension_semantics=("parallel", "arbitrary"),
            vmem_limit_bytes=32 * 1024 * 1024,
        ),
        cost_estimate=pl.CostEstimate(
            flops=2 * n_pad * d * latent_dim,
            transcendentals=0,
            bytes_accessed=(n_pad * d * 2 + nm * d * latent_dim * 2
                            + latent_dim * 4 + n_pad * latent_dim * 2)),
    )(x2d, w_enc_c, b_enc2d)

    # Decoder: independent (m, d) output tiles; both axes "parallel" so v7x
    # megacore has work even when nm == 1.
    recon2d = pl.pallas_call(
        _decoder_kernel,
        out_shape=jax.ShapeDtypeStruct((n_pad, d), out_dtype),
        grid_spec=pltpu.PrefetchScalarGridSpec(
            num_scalar_prefetch=0,
            grid=(nm, nd),
            in_specs=[
                pl.BlockSpec((tm, latent_dim), lambda m, dd: (m, 0)),    # latent (bf16)
                pl.BlockSpec((latent_dim, td), lambda m, dd: (0, dd)),   # W_dec
                pl.BlockSpec((1, td), lambda m, dd: (0, dd)),            # b_dec
            ],
            out_specs=pl.BlockSpec((tm, td), lambda m, dd: (m, dd)),
        ),
        compiler_params=pltpu.CompilerParams(
            dimension_semantics=("parallel", "parallel"),
            vmem_limit_bytes=32 * 1024 * 1024,
        ),
        cost_estimate=pl.CostEstimate(
            flops=2 * n_pad * d * latent_dim,
            transcendentals=0,
            bytes_accessed=(n_pad * latent_dim * 2 + nm * latent_dim * d * 2
                            + d * 4 + n_pad * d * out_isize)),
    )(latent_bf16, w_dec_c, b_dec2d)

    recon = recon2d[:n].reshape(n, c, h, w)
    latent = latent_bf16[:n].astype(out_dtype)
    return recon, latent


def make_params(key, d, latent_dim):
    """Deterministic synthetic parameters, stored in the kernel's native dtypes
    (bf16 weights, f32 biases) so there is no per-call weight-cast pass."""
    k1, k2, k3, k4 = jax.random.split(key, 4)
    w_enc = (jax.random.normal(k1, (d, latent_dim), jnp.float32)
             / jnp.sqrt(d)).astype(_COMPUTE_DTYPE)
    b_enc = jax.random.normal(k2, (latent_dim,), jnp.float32) * 0.01
    w_dec = (jax.random.normal(k3, (latent_dim, d), jnp.float32)
             / jnp.sqrt(latent_dim)).astype(_COMPUTE_DTYPE)
    b_dec = jax.random.normal(k4, (d,), jnp.float32) * 0.01
    return w_enc, b_enc, w_dec, b_dec


if __name__ == "__main__":
    key = jax.random.PRNGKey(0)
    k_x, k_p = jax.random.split(key)

    # Small NCHW input consistent with an image autoencoder.
    N, C, H, W = 2, 4, 16, 16
    D = C * H * W            # 1024 (multiple of 128 -> lane-dense)
    LATENT = 128             # latent dim, multiple of 128

    x = jax.random.normal(k_x, (N, C, H, W), jnp.float32)
    w_enc, b_enc, w_dec, b_dec = make_params(k_p, D, LATENT)

    # Reference mirroring the kernel's bf16-operand / f32-accumulate path.
    xb = x.reshape(N, D).astype(jnp.bfloat16)
    z_ref = jnp.maximum(
        jnp.dot(xb, w_enc, preferred_element_type=jnp.float32)
        + b_enc.reshape(1, -1), 0.0)
    recon_ref = (jnp.dot(z_ref.astype(jnp.bfloat16), w_dec,
                         preferred_element_type=jnp.float32)
                 + b_dec.reshape(1, -1)).reshape(N, C, H, W)

    # Fast (fully fused, single-invocation) path — the one used at this size.
    recon, latent = autoencoder_forward(x, w_enc, b_enc, w_dec, b_dec)
    jax.block_until_ready((recon, latent))
    assert recon.shape == (N, C, H, W) and latent.shape == (N, LATENT)
    assert jnp.allclose(recon, recon_ref, atol=1e-2, rtol=1e-2)
    assert jnp.allclose(latent, z_ref, atol=1e-2, rtol=1e-2)

    # Tiled (encoder K-reduction + parallel-D decoder) path, forced for coverage.
    recon_t, latent_t = autoencoder_forward(x, w_enc, b_enc, w_dec, b_dec,
                                            force_tiled=True)
    jax.block_until_ready((recon_t, latent_t))
    assert jnp.allclose(recon_t, recon_ref, atol=3e-2, rtol=3e-2)
    assert jnp.allclose(latent_t, z_ref, atol=3e-2, rtol=3e-2)

    print("KERNEL_OK")
</pallas_src>

<mosaic_0001>
module attributes {stable_mosaic.version = 11 : i64} {
  func.func @_fused_kernel(%arg0: i32, %arg1: memref<16x1024xbf16, #tpu.memory_space<vmem>>, %arg2: memref<1024x128xbf16, #tpu.memory_space<vmem>>, %arg3: memref<1x128xf32, #tpu.memory_space<vmem>>, %arg4: memref<128x1024xbf16, #tpu.memory_space<vmem>>, %arg5: memref<1x1024xf32, #tpu.memory_space<vmem>>, %arg6: memref<16x1024xf32, #tpu.memory_space<vmem>>, %arg7: memref<16x128xf32, #tpu.memory_space<vmem>>) attributes {dimension_semantics = [#tpu.dimension_semantics<parallel>], iteration_bounds = array<i64: 1>, scalar_prefetch = 0 : i64, scratch_operands = 0 : i64, tpu.core_type = #tpu.core_type<tc>, window_params = [{transform_indices = @transform_0, window_bounds = array<i64: 16, 1024>}, {pipeline_mode = #tpu.pipeline_mode<synchronous>, transform_indices = @transform_1, window_bounds = array<i64: 1024, 128>}, {pipeline_mode = #tpu.pipeline_mode<synchronous>, transform_indices = @transform_2, window_bounds = array<i64: 1, 128>}, {pipeline_mode = #tpu.pipeline_mode<synchronous>, transform_indices = @transform_3, window_bounds = array<i64: 128, 1024>}, {pipeline_mode = #tpu.pipeline_mode<synchronous>, transform_indices = @transform_4, window_bounds = array<i64: 1, 1024>}, {transform_indices = @transform_5, window_bounds = array<i64: 16, 1024>}, {transform_indices = @transform_6, window_bounds = array<i64: 16, 128>}]} {
    %c0 = arith.constant 0 : index
    %c0_0 = arith.constant 0 : index
    %0 = vector.load %arg1[%c0, %c0_0] : memref<16x1024xbf16, #tpu.memory_space<vmem>>, vector<16x1024xbf16>
    %c0_1 = arith.constant 0 : index
    %c0_2 = arith.constant 0 : index
    %1 = vector.load %arg2[%c0_1, %c0_2] : memref<1024x128xbf16, #tpu.memory_space<vmem>>, vector<1024x128xbf16>
    %cst = arith.constant dense<0.000000e+00> : vector<16x128xf32>
    %2 = tpu.matmul %0, %1, %cst {dimension_numbers = #tpu.dot_dimension_numbers<[1], [0], [0], [1], [0, 0, 1, 1], [], []>} : vector<16x1024xbf16>, vector<1024x128xbf16>, vector<16x128xf32> -> vector<16x128xf32>
    %c0_3 = arith.constant 0 : index
    %c0_4 = arith.constant 0 : index
    %3 = vector.load %arg3[%c0_3, %c0_4] : memref<1x128xf32, #tpu.memory_space<vmem>>, vector<1x128xf32>
    %4 = vector.broadcast %3 : vector<1x128xf32> to vector<16x128xf32>
    %5 = arith.addf %2, %4 : vector<16x128xf32>
    %cst_5 = arith.constant 0.000000e+00 : f32
    %6 = vector.broadcast %cst_5 : f32 to vector<16x128xf32>
    %7 = arith.maximumf %5, %6 : vector<16x128xf32>
    %c0_6 = arith.constant 0 : index
    %c0_7 = arith.constant 0 : index
    %8 = vector.load %arg7[%c0_6, %c0_7] : memref<16x128xf32, #tpu.memory_space<vmem>>, vector<16x128xf32>
    tpu.vector_store %arg7[%c0_6, %c0_7], %7 {strides = array<i32>} : memref<16x128xf32, #tpu.memory_space<vmem>>, vector<16x128xf32>,
    %9 = arith.truncf %7 : vector<16x128xf32> to vector<16x128xbf16>
    %c0_8 = arith.constant 0 : index
    %c0_9 = arith.constant 0 : index
    %10 = vector.load %arg4[%c0_8, %c0_9] : memref<128x1024xbf16, #tpu.memory_space<vmem>>, vector<128x1024xbf16>
    %cst_10 = arith.constant dense<0.000000e+00> : vector<16x1024xf32>
    %11 = tpu.matmul %9, %10, %cst_10 {dimension_numbers = #tpu.dot_dimension_numbers<[1], [0], [0], [1], [0, 0, 1, 1], [], []>} : vector<16x128xbf16>, vector<128x1024xbf16>, vector<16x1024xf32> -> vector<16x1024xf32>
    %c0_11 = arith.constant 0 : index
    %c0_12 = arith.constant 0 : index
    %12 = vector.load %arg5[%c0_11, %c0_12] : memref<1x1024xf32, #tpu.memory_space<vmem>>, vector<1x1024xf32>
    %13 = vector.broadcast %12 : vector<1x1024xf32> to vector<16x1024xf32>
    %14 = arith.addf %11, %13 : vector<16x1024xf32>
    %c0_13 = arith.constant 0 : index
    %c0_14 = arith.constant 0 : index
    %15 = vector.load %arg6[%c0_13, %c0_14] : memref<16x1024xf32, #tpu.memory_space<vmem>>, vector<16x1024xf32>
    tpu.vector_store %arg6[%c0_13, %c0_14], %14 {strides = array<i32>} : memref<16x1024xf32, #tpu.memory_space<vmem>>, vector<16x1024xf32>,
    return
  }
  func.func @transform_0(%arg0: i32) -> (i32, i32) {
    %c0_i32 = arith.constant 0 : i32
    %c0_i32_0 = arith.constant 0 : i32
    return %arg0, %c0_i32 : i32, i32
  }
  func.func @transform_1(%arg0: i32) -> (i32, i32) {
    %c0_i32 = arith.constant 0 : i32
    %c0_i32_0 = arith.constant 0 : i32
    %c0_i32_1 = arith.constant 0 : i32
    return %c0_i32, %c0_i32_0 : i32, i32
  }
  func.func @transform_2(%arg0: i32) -> (i32, i32) {
    %c0_i32 = arith.constant 0 : i32
    %c0_i32_0 = arith.constant 0 : i32
    %c0_i32_1 = arith.constant 0 : i32
    return %c0_i32, %c0_i32_0 : i32, i32
  }
  func.func @transform_3(%arg0: i32) -> (i32, i32) {
    %c0_i32 = arith.constant 0 : i32
    %c0_i32_0 = arith.constant 0 : i32
    %c0_i32_1 = arith.constant 0 : i32
    return %c0_i32, %c0_i32_0 : i32, i32
  }
  func.func @transform_4(%arg0: i32) -> (i32, i32) {
    %c0_i32 = arith.constant 0 : i32
    %c0_i32_0 = arith.constant 0 : i32
    %c0_i32_1 = arith.constant 0 : i32
    return %c0_i32, %c0_i32_0 : i32, i32
  }
  func.func @transform_5(%arg0: i32) -> (i32, i32) {
    %c0_i32 = arith.constant 0 : i32
    %c0_i32_0 = arith.constant 0 : i32
    return %arg0, %c0_i32 : i32, i32
  }
  func.func @transform_6(%arg0: i32) -> (i32, i32) {
    %c0_i32 = arith.constant 0 : i32
    %c0_i32_0 = arith.constant 0 : i32
    return %arg0, %c0_i32 : i32, i32
  }
}

</mosaic_0001>

<llo_original>
// kernel: tpu_custom_call.1
$region0: #{tpu_custom_call.1}
  #allocation0 [shape = 'u32[]', space=smem, size = 0x4, offset = 0x4, fixed_abs, tag = 'smem constant byte address 0x4 - core index']
  #allocation1 [shape = 'u32[144,128]{1,0:T(1,128)}', space=vmem, size = 0x12000, scoped, tag = 'internal scratch']
  %s0 = inlined_call_operand.hbm [shape: bf16[16,1024], index: 0, kind: input, shape index: {}]
  %s1 = inlined_call_operand.hbm [shape: bf16[1024,128], index: 1, kind: input, shape index: {}]
  %s2 = inlined_call_operand.vmem [shape: f32[1,128], index: 2, kind: input, shape index: {}]
  %s3 = inlined_call_operand.hbm [shape: bf16[128,1024], index: 3, kind: input, shape index: {}]
  %s4 = inlined_call_operand.hbm [shape: f32[1,1024], index: 4, kind: input, shape index: {}]
  %s5 = inlined_call_operand.hbm [shape: f32[16,1024], index: 5, kind: output, shape index: {0}]
  %s6 = inlined_call_operand.hbm [shape: f32[16,128], index: 6, kind: output, shape index: {1}]
  %7 = xla_tuple %s5, %s6
  %s8 = sld [smem:[#allocation0]]
  $region54: #{tpu_custom_call.1} parent=0
    _
  %s10 = ssub.s32 1, %s8
  %s11 = scalar_select 0, %s10, %s8
  $region1: #{tpu_custom_call.1} parent=0
    #allocation2 [shape = 'u8[32768]{0}', space=vmem, size = 0x8000, scoped, tag = 'input window, operand 0, single buffered']
    #allocation3 [shape = 's32[1]{0}', space=sflag, size = 0x4, scoped, tag = 'scoped memory for tpu_custom_call.1']
    #allocation4 [shape = 's32[1]{0}', space=sflag, size = 0x4, scoped, tag = 'scoped memory for tpu_custom_call.1']
    #allocation5 [shape = 'u8[262144]{0}', space=vmem, size = 0x40000, scoped, tag = 'input window, operand 1, single buffered']
    #allocation6 [shape = 's32[1]{0}', space=sflag, size = 0x4, scoped, tag = 'scoped memory for tpu_custom_call.1']
    #allocation7 [shape = 'u8[262144]{0}', space=vmem, size = 0x40000, scoped, tag = 'input window, operand 3, single buffered']
    #allocation8 [shape = 'u8[4096]{0}', space=vmem, size = 0x1000, scoped, tag = 'input window, operand 4, single buffered']
    #allocation9 [shape = 's32[1]{0}', space=sflag, size = 0x4, scoped, tag = 'scoped memory for tpu_custom_call.1']
    #allocation10 [shape = 'u8[65536]{0}', space=vmem, size = 0x10000, scoped, tag = 'output window, operand 0, single buffered']
    #allocation11 [shape = 'u8[8192]{0}', space=vmem, size = 0x2000, scoped, tag = 'output window, operand 1, single buffered']
    #allocation12 [shape = 's32[1]{0}', space=sflag, size = 0x4, scoped, tag = 'scoped memory for tpu_custom_call.1']
    %12 = vsyncpa [#allocation3], 0
    %13 = vsyncpa [#allocation6], 0
    %14 = vsyncpa [#allocation9], 0
    %15 = vsyncpa [#allocation4], 0
    %16 = vsyncpa [#allocation12], 0
    // Predicated region
    $region2: #{tpu_custom_call.1} parent=1 // pred_check
      _
    $region3: #{tpu_custom_call.1} parent=1 // pred_check_branch
      %18 = sbr.rel (0) target = $region5
    $region4: #{tpu_custom_call.1} parent=1 // pred_region
      %s20 = ssub.s32 1024, 1024
      %21 = vsyncadd [#allocation3], %s20
      %s22 = sshll.u32 [#allocation2], 4
      %s23 = int_to_ptr.vmem [resolvable:$true] %s22
      %28 = dma.hbm_to_vmem [thread:$0]  %s0, 1024, %s23, [#allocation3], 512, 512, 32
    $region5: #{tpu_custom_call.1} parent=1 // pred_fallthru
      _
    // Predicated region
    $region6: #{tpu_custom_call.1} parent=1 // pred_check
      _
    $region7: #{tpu_custom_call.1} parent=1 // pred_check_branch
      %30 = sbr.rel (0) target = $region9
    $region8: #{tpu_custom_call.1} parent=1 // pred_region
      %s32 = ssub.s32 8192, 8192
      %33 = vsyncadd [#allocation6], %s32
      %s34 = sshll.u32 [#allocation5], 4
      %s35 = int_to_ptr.vmem [resolvable:$true] %s34
      %40 = dma.hbm_to_vmem [thread:$0]  %s1, 8192, %s35, [#allocation6], 64, 64, 4
    $region9: #{tpu_custom_call.1} parent=1 // pred_fallthru
      _
    // Predicated region
    $region10: #{tpu_custom_call.1} parent=1 // pred_check
      _
    $region11: #{tpu_custom_call.1} parent=1 // pred_check_branch
      %42 = sbr.rel (0) target = $region13
    $region12: #{tpu_custom_call.1} parent=1 // pred_region
      _
    $region13: #{tpu_custom_call.1} parent=1 // pred_fallthru
      _
    // Predicated region
    $region14: #{tpu_custom_call.1} parent=1 // pred_check
      _
    $region15: #{tpu_custom_call.1} parent=1 // pred_check_branch
      %44 = sbr.rel (0) target = $region17
    $region16: #{tpu_custom_call.1} parent=1 // pred_region
      %s46 = ssub.s32 8192, 8192
      %47 = vsyncadd [#allocation6], %s46
      %s48 = sshll.u32 [#allocation7], 4
      %s49 = int_to_ptr.vmem [resolvable:$true] %s48
      %54 = dma.hbm_to_vmem [thread:$0]  %s3, 8192, %s49, [#allocation6], 512, 512, 32
    $region17: #{tpu_custom_call.1} parent=1 // pred_fallthru
      _
    // Predicated region
    $region18: #{tpu_custom_call.1} parent=1 // pred_check
      _
    $region19: #{tpu_custom_call.1} parent=1 // pred_check_branch
      %56 = sbr.rel (0) target = $region21
    $region20: #{tpu_custom_call.1} parent=1 // pred_region
      %s58 = ssub.s32 128, 128
      %59 = vsyncadd [#allocation9], %s58
      %s61 = sshll.u32 [#allocation8], 4
      %s62 = int_to_ptr.vmem [resolvable:$true] %s61
      %64 = dma.hbm_to_vmem [thread:$0]  %s4, 128, %s62, [#allocation9]
    $region21: #{tpu_custom_call.1} parent=1 // pred_fallthru
      _
    // Predicated region
    $region22: #{tpu_custom_call.1} parent=1 // pred_check
      _
    $region23: #{tpu_custom_call.1} parent=1 // pred_check_branch
      %66 = sbr.rel (0) target = $region25
    $region24: #{tpu_custom_call.1} parent=1 // pred_region
      %67 = dma.done [#allocation3], 1024
    $region25: #{tpu_custom_call.1} parent=1 // pred_fallthru
      _
    // Predicated region
    $region26: #{tpu_custom_call.1} parent=1 // pred_check
      _
    $region27: #{tpu_custom_call.1} parent=1 // pred_check_branch
      %69 = sbr.rel (0) target = $region29
    $region28: #{tpu_custom_call.1} parent=1 // pred_region
      %70 = dma.done [#allocation6], 8192
    $region29: #{tpu_custom_call.1} parent=1 // pred_fallthru
      _
    // Predicated region
    $region30: #{tpu_custom_call.1} parent=1 // pred_check
      _
    $region31: #{tpu_custom_call.1} parent=1 // pred_check_branch
      %72 = sbr.rel (0) target = $region33
    $region32: #{tpu_custom_call.1} parent=1 // pred_region
      %73 = dma.done [#allocation6], 8192
    $region33: #{tpu_custom_call.1} parent=1 // pred_fallthru
      _
    // Predicated region
    $region34: #{tpu_custom_call.1} parent=1 // pred_check
      _
    $region35: #{tpu_custom_call.1} parent=1 // pred_check_branch
      %75 = sbr.rel (0) target = $region37
    $region36: #{tpu_custom_call.1} parent=1 // pred_region
      %76 = dma.done [#allocation9], 128
    $region37: #{tpu_custom_call.1} parent=1 // pred_fallthru
      _
    %v78 = vld [vmem:[#allocation2] sm:$0xff]
    %v79 = vld [vmem:[#allocation2 + $0x8] sm:$0xff]
    %v80 = vld [vmem:[#allocation2 + $0x10] sm:$0xff]
    %v81 = vld [vmem:[#allocation2 + $0x18] sm:$0xff]
    %v82 = vld [vmem:[#allocation2 + $0x20] sm:$0xff]
    %v83 = vld [vmem:[#allocation2 + $0x28] sm:$0xff]
    %v84 = vld [vmem:[#allocation2 + $0x30] sm:$0xff]
    %v85 = vld [vmem:[#allocation2 + $0x38] sm:$0xff]
    %v86 = vld [vmem:[#allocation5] sm:$0xf]
    %v87 = vld [vmem:[#allocation5 + $0x4] sm:$0xf]
    %v88 = vld [vmem:[#allocation5 + $0x8] sm:$0xf]
    %v89 = vld [vmem:[#allocation5 + $0xc] sm:$0xf]
    %v90 = vld [vmem:[#allocation5 + $0x10] sm:$0xf]
    %v91 = vld [vmem:[#allocation5 + $0x14] sm:$0xf]
    %v92 = vld [vmem:[#allocation5 + $0x18] sm:$0xf]
    %v93 = vld [vmem:[#allocation5 + $0x1c] sm:$0xf]
    %v94 = vld [vmem:[#allocation5 + $0x20] sm:$0xf]
    %v95 = vld [vmem:[#allocation5 + $0x24] sm:$0xf]
    %v96 = vld [vmem:[#allocation5 + $0x28] sm:$0xf]
    %v97 = vld [vmem:[#allocation5 + $0x2c] sm:$0xf]
    %v98 = vld [vmem:[#allocation5 + $0x30] sm:$0xf]
    %v99 = vld [vmem:[#allocation5 + $0x34] sm:$0xf]
    %v100 = vld [vmem:[#allocation5 + $0x38] sm:$0xf]
    %v101 = vld [vmem:[#allocation5 + $0x3c] sm:$0xf]
    %v102 = vld [vmem:[#allocation5 + $0x40] sm:$0xf]
    %v103 = vld [vmem:[#allocation5 + $0x44] sm:$0xf]
    %v104 = vld [vmem:[#allocation5 + $0x48] sm:$0xf]
    %v105 = vld [vmem:[#allocation5 + $0x4c] sm:$0xf]
    %v106 = vld [vmem:[#allocation5 + $0x50] sm:$0xf]
    %v107 = vld [vmem:[#allocation5 + $0x54] sm:$0xf]
    %v108 = vld [vmem:[#allocation5 + $0x58] sm:$0xf]
    %v109 = vld [vmem:[#allocation5 + $0x5c] sm:$0xf]
    %v110 = vld [vmem:[#allocation5 + $0x60] sm:$0xf]
    %v111 = vld [vmem:[#allocation5 + $0x64] sm:$0xf]
    %v112 = vld [vmem:[#allocation5 + $0x68] sm:$0xf]
    %v113 = vld [vmem:[#allocation5 + $0x6c] sm:$0xf]
    %v114 = vld [vmem:[#allocation5 + $0x70] sm:$0xf]
    %v115 = vld [vmem:[#allocation5 + $0x74] sm:$0xf]
    %v116 = vld [vmem:[#allocation5 + $0x78] sm:$0xf]
    %v117 = vld [vmem:[#allocation5 + $0x7c] sm:$0xf]
    %v118 = vld [vmem:[#allocation5 + $0x80] sm:$0xf]
    %v119 = vld [vmem:[#allocation5 + $0x84] sm:$0xf]
    %v120 = vld [vmem:[#allocation5 + $0x88] sm:$0xf]
    %v121 = vld [vmem:[#allocation5 + $0x8c] sm:$0xf]
    %v122 = vld [vmem:[#allocation5 + $0x90] sm:$0xf]
    %v123 = vld [vmem:[#allocation5 + $0x94] sm:$0xf]
    %v124 = vld [vmem:[#allocation5 + $0x98] sm:$0xf]
    %v125 = vld [vmem:[#allocation5 + $0x9c] sm:$0xf]
    %v126 = vld [vmem:[#allocation5 + $0xa0] sm:$0xf]
    %v127 = vld [vmem:[#allocation5 + $0xa4] sm:$0xf]
    %v128 = vld [vmem:[#allocation5 + $0xa8] sm:$0xf]
    %v129 = vld [vmem:[#allocation5 + $0xac] sm:$0xf]
    %v130 = vld [vmem:[#allocation5 + $0xb0] sm:$0xf]
    %v131 = vld [vmem:[#allocation5 + $0xb4] sm:$0xf]
    %v132 = vld [vmem:[#allocation5 + $0xb8] sm:$0xf]
    %v133 = vld [vmem:[#allocation5 + $0xbc] sm:$0xf]
    %v134 = vld [vmem:[#allocation5 + $0xc0] sm:$0xf]
    %v135 = vld [vmem:[#allocation5 + $0xc4] sm:$0xf]
    %v136 = vld [vmem:[#allocation5 + $0xc8] sm:$0xf]
    %v137 = vld [vmem:[#allocation5 + $0xcc] sm:$0xf]
    %v138 = vld [vmem:[#allocation5 + $0xd0] sm:$0xf]
    %v139 = vld [vmem:[#allocation5 + $0xd4] sm:$0xf]
    %v140 = vld [vmem:[#allocation5 + $0xd8] sm:$0xf]
    %v141 = vld [vmem:[#allocation5 + $0xdc] sm:$0xf]
    %v142 = vld [vmem:[#allocation5 + $0xe0] sm:$0xf]
    %v143 = vld [vmem:[#allocation5 + $0xe4] sm:$0xf]
    %v144 = vld [vmem:[#allocation5 + $0xe8] sm:$0xf]
    %v145 = vld [vmem:[#allocation5 + $0xec] sm:$0xf]
    %v146 = vld [vmem:[#allocation5 + $0xf0] sm:$0xf]
    %v147 = vld [vmem:[#allocation5 + $0xf4] sm:$0xf]
    %v148 = vld [vmem:[#allocation5 + $0xf8] sm:$0xf]
    %v149 = vld [vmem:[#allocation5 + $0xfc] sm:$0xf]
    %v150 = vld [vmem:[#allocation5 + $0x100] sm:$0xf]
    %v151 = vld [vmem:[#allocation5 + $0x104] sm:$0xf]
    %v152 = vld [vmem:[#allocation5 + $0x108] sm:$0xf]
    %v153 = vld [vmem:[#allocation5 + $0x10c] sm:$0xf]
    %v154 = vld [vmem:[#allocation5 + $0x110] sm:$0xf]
    %v155 = vld [vmem:[#allocation5 + $0x114] sm:$0xf]
    %v156 = vld [vmem:[#allocation5 + $0x118] sm:$0xf]
    %v157 = vld [vmem:[#allocation5 + $0x11c] sm:$0xf]
    %v158 = vld [vmem:[#allocation5 + $0x120] sm:$0xf]
    %v159 = vld [vmem:[#allocation5 + $0x124] sm:$0xf]
    %v160 = vld [vmem:[#allocation5 + $0x128] sm:$0xf]
    %v161 = vld [vmem:[#allocation5 + $0x12c] sm:$0xf]
    %v162 = vld [vmem:[#allocation5 + $0x130] sm:$0xf]
    %v163 = vld [vmem:[#allocation5 + $0x134] sm:$0xf]
    %v164 = vld [vmem:[#allocation5 + $0x138] sm:$0xf]
    %v165 = vld [vmem:[#allocation5 + $0x13c] sm:$0xf]
    %v166 = vld [vmem:[#allocation5 + $0x140] sm:$0xf]
    %v167 = vld [vmem:[#allocation5 + $0x144] sm:$0xf]
    %v168 = vld [vmem:[#allocation5 + $0x148] sm:$0xf]
    %v169 = vld [vmem:[#allocation5 + $0x14c] sm:$0xf]
    %v170 = vld [vmem:[#allocation5 + $0x150] sm:$0xf]
    %v171 = vld [vmem:[#allocation5 + $0x154] sm:$0xf]
    %v172 = vld [vmem:[#allocation5 + $0x158] sm:$0xf]
    %v173 = vld [vmem:[#allocation5 + $0x15c] sm:$0xf]
    %v174 = vld [vmem:[#allocation5 + $0x160] sm:$0xf]
    %v175 = vld [vmem:[#allocation5 + $0x164] sm:$0xf]
    %v176 = vld [vmem:[#allocation5 + $0x168] sm:$0xf]
    %v177 = vld [vmem:[#allocation5 + $0x16c] sm:$0xf]
    %v178 = vld [vmem:[#allocation5 + $0x170] sm:$0xf]
    %v179 = vld [vmem:[#allocation5 + $0x174] sm:$0xf]
    %v180 = vld [vmem:[#allocation5 + $0x178] sm:$0xf]
    %v181 = vld [vmem:[#allocation5 + $0x17c] sm:$0xf]
    %v182 = vld [vmem:[#allocation5 + $0x180] sm:$0xf]
    %v183 = vld [vmem:[#allocation5 + $0x184] sm:$0xf]
    %v184 = vld [vmem:[#allocation5 + $0x188] sm:$0xf]
    %v185 = vld [vmem:[#allocation5 + $0x18c] sm:$0xf]
    %v186 = vld [vmem:[#allocation5 + $0x190] sm:$0xf]
    %v187 = vld [vmem:[#allocation5 + $0x194] sm:$0xf]
    %v188 = vld [vmem:[#allocation5 + $0x198] sm:$0xf]
    %v189 = vld [vmem:[#allocation5 + $0x19c] sm:$0xf]
    %v190 = vld [vmem:[#allocation5 + $0x1a0] sm:$0xf]
    %v191 = vld [vmem:[#allocation5 + $0x1a4] sm:$0xf]
    %v192 = vld [vmem:[#allocation5 + $0x1a8] sm:$0xf]
    %v193 = vld [vmem:[#allocation5 + $0x1ac] sm:$0xf]
    %v194 = vld [vmem:[#allocation5 + $0x1b0] sm:$0xf]
    %v195 = vld [vmem:[#allocation5 + $0x1b4] sm:$0xf]
    %v196 = vld [vmem:[#allocation5 + $0x1b8] sm:$0xf]
    %v197 = vld [vmem:[#allocation5 + $0x1bc] sm:$0xf]
    %v198 = vld [vmem:[#allocation5 + $0x1c0] sm:$0xf]
    %v199 = vld [vmem:[#allocation5 + $0x1c4] sm:$0xf]
    %v200 = vld [vmem:[#allocation5 + $0x1c8] sm:$0xf]
    %v201 = vld [vmem:[#allocation5 + $0x1cc] sm:$0xf]
    %v202 = vld [vmem:[#allocation5 + $0x1d0] sm:$0xf]
    %v203 = vld [vmem:[#allocation5 + $0x1d4] sm:$0xf]
    %v204 = vld [vmem:[#allocation5 + $0x1d8] sm:$0xf]
    %v205 = vld [vmem:[#allocation5 + $0x1dc] sm:$0xf]
    %v206 = vld [vmem:[#allocation5 + $0x1e0] sm:$0xf]
    %v207 = vld [vmem:[#allocation5 + $0x1e4] sm:$0xf]
    %v208 = vld [vmem:[#allocation5 + $0x1e8] sm:$0xf]
    %v209 = vld [vmem:[#allocation5 + $0x1ec] sm:$0xf]
    %v210 = vld [vmem:[#allocation5 + $0x1f0] sm:$0xf]
    %v211 = vld [vmem:[#allocation5 + $0x1f4] sm:$0xf]
    %v212 = vld [vmem:[#allocation5 + $0x1f8] sm:$0xf]
    %v213 = vld [vmem:[#allocation5 + $0x1fc] sm:$0xf]
    %v214 = vld [vmem:[%s2] sm:$0x1]
    %v216 = vlaneseq
    %v217 = vshrl.u32 %v216, 7
    %v218 = vsub.s32 0, %v217
    %v219 = vrot.slane %v214, %v218
    %v229 = vunpack.c.l.b16 %v78
    %v230 = vunpack.c.h.b16 %v78
    %v231 = vunpack.c.l.b16 %v79
    %v232 = vunpack.c.h.b16 %v79
    %v233 = vunpack.c.l.b16 %v80
    %v234 = vunpack.c.h.b16 %v80
    %v235 = vunpack.c.l.b16 %v81
    %v236 = vunpack.c.h.b16 %v81
    %v237 = vunpack.c.l.b16 %v82
    %v238 = vunpack.c.h.b16 %v82
    %v239 = vunpack.c.l.b16 %v83
    %v240 = vunpack.c.h.b16 %v83
    %v241 = vunpack.c.l.b16 %v84
    %v242 = vunpack.c.h.b16 %v84
    %v243 = vunpack.c.l.b16 %v85
    %v244 = vunpack.c.h.b16 %v85
    %v245 = vpack.c.b16 %v237, %v229
    %v246 = vpack.c.b16 %v238, %v230
    %v247 = vpack.c.b16 %v239, %v231
    %v248 = vpack.c.b16 %v240, %v232
    %v249 = vpack.c.b16 %v241, %v233
    %v250 = vpack.c.b16 %v242, %v234
    %v251 = vpack.c.b16 %v243, %v235
    %v252 = vpack.c.b16 %v244, %v236
    %v389 = vunpack.c.l.b16 %v86
    %v390 = vunpack.c.l.b16 %v87
    %v391 = vunpack.c.l.b16 %v88
    %v392 = vunpack.c.l.b16 %v89
    %v393 = vunpack.c.l.b16 %v90
    %v394 = vunpack.c.l.b16 %v91
    %v395 = vunpack.c.l.b16 %v92
    %v396 = vunpack.c.l.b16 %v93
    %v397 = vunpack.c.l.b16 %v94
    %v398 = vunpack.c.l.b16 %v95
    %v399 = vunpack.c.l.b16 %v96
    %v400 = vunpack.c.l.b16 %v97
    %v401 = vunpack.c.l.b16 %v98
    %v402 = vunpack.c.l.b16 %v99
    %v403 = vunpack.c.l.b16 %v100
    %v404 = vunpack.c.l.b16 %v101
    %v405 = vunpack.c.l.b16 %v102
    %v406 = vunpack.c.l.b16 %v103
    %v407 = vunpack.c.l.b16 %v104
    %v408 = vunpack.c.l.b16 %v105
    %v409 = vunpack.c.l.b16 %v106
    %v410 = vunpack.c.l.b16 %v107
    %v411 = vunpack.c.l.b16 %v108
    %v412 = vunpack.c.l.b16 %v109
    %v413 = vunpack.c.l.b16 %v110
    %v414 = vunpack.c.l.b16 %v111
    %v415 = vunpack.c.l.b16 %v112
    %v416 = vunpack.c.l.b16 %v113
    %v417 = vunpack.c.l.b16 %v114
    %v418 = vunpack.c.l.b16 %v115
    %v419 = vunpack.c.l.b16 %v116
    %v420 = vunpack.c.l.b16 %v117
    %v421 = vunpack.c.l.b16 %v118
    %v422 = vunpack.c.l.b16 %v119
    %v423 = vunpack.c.l.b16 %v120
    %v424 = vunpack.c.l.b16 %v121
    %v425 = vunpack.c.l.b16 %v122
    %v426 = vunpack.c.l.b16 %v123
    %v427 = vunpack.c.l.b16 %v124
    %v428 = vunpack.c.l.b16 %v125
    %v429 = vunpack.c.l.b16 %v126
    %v430 = vunpack.c.l.b16 %v127
    %v431 = vunpack.c.l.b16 %v128
    %v432 = vunpack.c.l.b16 %v129
    %v433 = vunpack.c.l.b16 %v130
    %v434 = vunpack.c.l.b16 %v131
    %v435 = vunpack.c.l.b16 %v132
    %v436 = vunpack.c.l.b16 %v133
    %v437 = vunpack.c.l.b16 %v134
    %v438 = vunpack.c.l.b16 %v135
    %v439 = vunpack.c.l.b16 %v136
    %v440 = vunpack.c.l.b16 %v137
    %v441 = vunpack.c.l.b16 %v138
    %v442 = vunpack.c.l.b16 %v139
    %v443 = vunpack.c.l.b16 %v140
    %v444 = vunpack.c.l.b16 %v141
    %v445 = vunpack.c.l.b16 %v142
    %v446 = vunpack.c.l.b16 %v143
    %v447 = vunpack.c.l.b16 %v144
    %v448 = vunpack.c.l.b16 %v145
    %v449 = vunpack.c.l.b16 %v146
    %v450 = vunpack.c.l.b16 %v147
    %v451 = vunpack.c.l.b16 %v148
    %v452 = vunpack.c.l.b16 %v149
    %v453 = vunpack.c.l.b16 %v150
    %v454 = vunpack.c.l.b16 %v151
    %v455 = vunpack.c.l.b16 %v152
    %v456 = vunpack.c.l.b16 %v153
    %v457 = vunpack.c.l.b16 %v154
    %v458 = vunpack.c.l.b16 %v155
    %v459 = vunpack.c.l.b16 %v156
    %v460 = vunpack.c.l.b16 %v157
    %v461 = vunpack.c.l.b16 %v158
    %v462 = vunpack.c.l.b16 %v159
    %v463 = vunpack.c.l.b16 %v160
    %v464 = vunpack.c.l.b16 %v161
    %v465 = vunpack.c.l.b16 %v162
    %v466 = vunpack.c.l.b16 %v163
    %v467 = vunpack.c.l.b16 %v164
    %v468 = vunpack.c.l.b16 %v165
    %v469 = vunpack.c.l.b16 %v166
    %v470 = vunpack.c.l.b16 %v167
    %v471 = vunpack.c.l.b16 %v168
    %v472 = vunpack.c.l.b16 %v169
    %v473 = vunpack.c.l.b16 %v170
    %v474 = vunpack.c.l.b16 %v171
    %v475 = vunpack.c.l.b16 %v172
    %v476 = vunpack.c.l.b16 %v173
    %v477 = vunpack.c.l.b16 %v174
    %v478 = vunpack.c.l.b16 %v175
    %v479 = vunpack.c.l.b16 %v176
    %v480 = vunpack.c.l.b16 %v177
    %v481 = vunpack.c.l.b16 %v178
    %v482 = vunpack.c.l.b16 %v179
    %v483 = vunpack.c.l.b16 %v180
    %v484 = vunpack.c.l.b16 %v181
    %v485 = vunpack.c.l.b16 %v182
    %v486 = vunpack.c.l.b16 %v183
    %v487 = vunpack.c.l.b16 %v184
    %v488 = vunpack.c.l.b16 %v185
    %v489 = vunpack.c.l.b16 %v186
    %v490 = vunpack.c.l.b16 %v187
    %v491 = vunpack.c.l.b16 %v188
    %v492 = vunpack.c.l.b16 %v189
    %v493 = vunpack.c.l.b16 %v190
    %v494 = vunpack.c.l.b16 %v191
    %v495 = vunpack.c.l.b16 %v192
    %v496 = vunpack.c.l.b16 %v193
    %v497 = vunpack.c.l.b16 %v194
    %v498 = vunpack.c.l.b16 %v195
    %v499 = vunpack.c.l.b16 %v196
    %v500 = vunpack.c.l.b16 %v197
    %v501 = vunpack.c.l.b16 %v198
    %v502 = vunpack.c.l.b16 %v199
    %v503 = vunpack.c.l.b16 %v200
    %v504 = vunpack.c.l.b16 %v201
    %v505 = vunpack.c.l.b16 %v202
    %v506 = vunpack.c.l.b16 %v203
    %v507 = vunpack.c.l.b16 %v204
    %v508 = vunpack.c.l.b16 %v205
    %v509 = vunpack.c.l.b16 %v206
    %v510 = vunpack.c.l.b16 %v207
    %v511 = vunpack.c.l.b16 %v208
    %v512 = vunpack.c.l.b16 %v209
    %v513 = vunpack.c.l.b16 %v210
    %v514 = vunpack.c.l.b16 %v211
    %v515 = vunpack.c.l.b16 %v212
    %v516 = vunpack.c.l.b16 %v213
    %v517 = vpack.c.b16 %v390, %v389
    %v518 = vpack.c.b16 %v392, %v391
    %v519 = vpack.c.b16 %v394, %v393
    %v520 = vpack.c.b16 %v396, %v395
    %v521 = vpack.c.b16 %v398, %v397
    %v522 = vpack.c.b16 %v400, %v399
    %v523 = vpack.c.b16 %v402, %v401
    %v524 = vpack.c.b16 %v404, %v403
    %v525 = vpack.c.b16 %v406, %v405
    %v526 = vpack.c.b16 %v408, %v407
    %v527 = vpack.c.b16 %v410, %v409
    %v528 = vpack.c.b16 %v412, %v411
    %v529 = vpack.c.b16 %v414, %v413
    %v530 = vpack.c.b16 %v416, %v415
    %v531 = vpack.c.b16 %v418, %v417
    %v532 = vpack.c.b16 %v420, %v419
    %v533 = vpack.c.b16 %v422, %v421
    %v534 = vpack.c.b16 %v424, %v423
    %v535 = vpack.c.b16 %v426, %v425
    %v536 = vpack.c.b16 %v428, %v427
    %v537 = vpack.c.b16 %v430, %v429
    %v538 = vpack.c.b16 %v432, %v431
    %v539 = vpack.c.b16 %v434, %v433
    %v540 = vpack.c.b16 %v436, %v435
    %v541 = vpack.c.b16 %v438, %v437
    %v542 = vpack.c.b16 %v440, %v439
    %v543 = vpack.c.b16 %v442, %v441
    %v544 = vpack.c.b16 %v444, %v443
    %v545 = vpack.c.b16 %v446, %v445
    %v546 = vpack.c.b16 %v448, %v447
    %v547 = vpack.c.b16 %v450, %v449
    %v548 = vpack.c.b16 %v452, %v451
    %v549 = vpack.c.b16 %v454, %v453
    %v550 = vpack.c.b16 %v456, %v455
    %v551 = vpack.c.b16 %v458, %v457
    %v552 = vpack.c.b16 %v460, %v459
    %v553 = vpack.c.b16 %v462, %v461
    %v554 = vpack.c.b16 %v464, %v463
    %v555 = vpack.c.b16 %v466, %v465
    %v556 = vpack.c.b16 %v468, %v467
    %v557 = vpack.c.b16 %v470, %v469
    %v558 = vpack.c.b16 %v472, %v471
    %v559 = vpack.c.b16 %v474, %v473
    %v560 = vpack.c.b16 %v476, %v475
    %v561 = vpack.c.b16 %v478, %v477
    %v562 = vpack.c.b16 %v480, %v479
    %v563 = vpack.c.b16 %v482, %v481
    %v564 = vpack.c.b16 %v484, %v483
    %v565 = vpack.c.b16 %v486, %v485
    %v566 = vpack.c.b16 %v488, %v487
    %v567 = vpack.c.b16 %v490, %v489
    %v568 = vpack.c.b16 %v492, %v491
    %v569 = vpack.c.b16 %v494, %v493
    %v570 = vpack.c.b16 %v496, %v495
    %v571 = vpack.c.b16 %v498, %v497
    %v572 = vpack.c.b16 %v500, %v499
    %v573 = vpack.c.b16 %v502, %v501
    %v574 = vpack.c.b16 %v504, %v503
    %v575 = vpack.c.b16 %v506, %v505
    %v576 = vpack.c.b16 %v508, %v507
    %v577 = vpack.c.b16 %v510, %v509
    %v578 = vpack.c.b16 %v512, %v511
    %v579 = vpack.c.b16 %v514, %v513
    %v580 = vpack.c.b16 %v516, %v515
    %645 = vmatprep.subr.bf16.mxu0 0
    %646 = vmatpush1.bf16.msra.mxu0 %v524
    %647 = vmatprep.subr.bf16.mxu0 0
    %648 = vmatpush1.bf16.msra.mxu0 %v523
    %649 = vmatprep.subr.bf16.mxu0 0
    %650 = vmatpush1.bf16.msra.mxu0 %v522
    %651 = vmatprep.subr.bf16.mxu0 0
    %652 = vmatpush1.bf16.msra.mxu0 %v521
    %653 = vmatprep.subr.bf16.mxu0 0
    %654 = vmatpush1.bf16.msra.mxu0 %v520
    %655 = vmatprep.subr.bf16.mxu0 0
    %656 = vmatpush1.bf16.msra.mxu0 %v519
    %657 = vmatprep.subr.bf16.mxu0 0
    %658 = vmatpush1.bf16.msra.mxu0 %v518
    %659 = vmatprep.subr.bf16.mxu0 0
    %660 = vmatpush1.bf16.msra.mxu0 %v517
    %661 = vmatprep.subr.bf16.mxu0 0
    %662 = vmatpush2.bf16.msra.mxu0 %v532
    %663 = vmatprep.subr.bf16.mxu0 0
    %664 = vmatpush2.bf16.msra.mxu0 %v531
    %665 = vmatprep.subr.bf16.mxu0 0
    %666 = vmatpush2.bf16.msra.mxu0 %v530
    %667 = vmatprep.subr.bf16.mxu0 0
    %668 = vmatpush2.bf16.msra.mxu0 %v529
    %669 = vmatprep.subr.bf16.mxu0 0
    %670 = vmatpush2.bf16.msra.mxu0 %v528
    %671 = vmatprep.subr.bf16.mxu0 0
    %672 = vmatpush2.bf16.msra.mxu0 %v527
    %673 = vmatprep.subr.bf16.mxu0 0
    %674 = vmatpush2.bf16.msra.mxu0 %v526
    %675 = vmatprep.subr.bf16.mxu0 0
    %676 = vmatpush2.bf16.msra.mxu0 %v525
    %677 = vmatprep.mubr.bf16.mxu0 %v246
    %678 = vmatmul.mubr.bf16.gmra.mxu0 %v245
    %v679 = vpop.f32.mrf.mxu0
    %v680 = vadd.f32 %v219, %v679
    %v681 = vpop.f32.mrf.mxu0
    %v682 = vpop.f32.mrf.mxu0
    %v683 = vadd.f32 %v219, %v682
    %v684 = vpop.f32.mrf.mxu0
    %685 = vdwg.mxu0
    %686 = vmatprep.subr.bf16.mxu0 0
    %687 = vmatpush1.bf16.msra.mxu0 %v540
    %688 = vmatprep.subr.bf16.mxu0 0
    %689 = vmatpush1.bf16.msra.mxu0 %v539
    %690 = vmatprep.subr.bf16.mxu0 0
    %691 = vmatpush1.bf16.msra.mxu0 %v538
    %692 = vmatprep.subr.bf16.mxu0 0
    %693 = vmatpush1.bf16.msra.mxu0 %v537
    %694 = vmatprep.subr.bf16.mxu0 0
    %695 = vmatpush1.bf16.msra.mxu0 %v536
    %696 = vmatprep.subr.bf16.mxu0 0
    %697 = vmatpush1.bf16.msra.mxu0 %v535
    %698 = vmatprep.subr.bf16.mxu0 0
    %699 = vmatpush1.bf16.msra.mxu0 %v534
    %700 = vmatprep.subr.bf16.mxu0 0
    %701 = vmatpush1.bf16.msra.mxu0 %v533
    %702 = vmatprep.subr.bf16.mxu0 0
    %703 = vmatpush2.bf16.msra.mxu0 %v548
    %704 = vmatprep.subr.bf16.mxu0 0
    %705 = vmatpush2.bf16.msra.mxu0 %v547
    %706 = vmatprep.subr.bf16.mxu0 0
    %707 = vmatpush2.bf16.msra.mxu0 %v546
    %708 = vmatprep.subr.bf16.mxu0 0
    %709 = vmatpush2.bf16.msra.mxu0 %v545
    %710 = vmatprep.subr.bf16.mxu0 0
    %711 = vmatpush2.bf16.msra.mxu0 %v544
    %712 = vmatprep.subr.bf16.mxu0 0
    %713 = vmatpush2.bf16.msra.mxu0 %v543
    %714 = vmatprep.subr.bf16.mxu0 0
    %715 = vmatpush2.bf16.msra.mxu0 %v542
    %716 = vmatprep.subr.bf16.mxu0 0
    %717 = vmatpush2.bf16.msra.mxu0 %v541
    %718 = vmatprep.mubr.bf16.mxu0 %v248
    %719 = vmatmul.mubr.bf16.gmra.mxu0 %v247
    %v720 = vpop.f32.mrf.mxu0
    %v721 = vadd.f32 %v680, %v720
    %v722 = vpop.f32.mrf.mxu0
    %v723 = vpop.f32.mrf.mxu0
    %v724 = vadd.f32 %v683, %v723
    %v725 = vpop.f32.mrf.mxu0
    %726 = vdwg.mxu0
    %727 = vmatprep.subr.bf16.mxu0 0
    %728 = vmatpush1.bf16.msra.mxu0 %v556
    %729 = vmatprep.subr.bf16.mxu0 0
    %730 = vmatpush1.bf16.msra.mxu0 %v555
    %731 = vmatprep.subr.bf16.mxu0 0
    %732 = vmatpush1.bf16.msra.mxu0 %v554
    %733 = vmatprep.subr.bf16.mxu0 0
    %734 = vmatpush1.bf16.msra.mxu0 %v553
    %735 = vmatprep.subr.bf16.mxu0 0
    %736 = vmatpush1.bf16.msra.mxu0 %v552
    %737 = vmatprep.subr.bf16.mxu0 0
    %738 = vmatpush1.bf16.msra.mxu0 %v551
    %739 = vmatprep.subr.bf16.mxu0 0
    %740 = vmatpush1.bf16.msra.mxu0 %v550
    %741 = vmatprep.subr.bf16.mxu0 0
    %742 = vmatpush1.bf16.msra.mxu0 %v549
    %743 = vmatprep.subr.bf16.mxu0 0
    %744 = vmatpush2.bf16.msra.mxu0 %v564
    %745 = vmatprep.subr.bf16.mxu0 0
    %746 = vmatpush2.bf16.msra.mxu0 %v563
    %747 = vmatprep.subr.bf16.mxu0 0
    %748 = vmatpush2.bf16.msra.mxu0 %v562
    %749 = vmatprep.subr.bf16.mxu0 0
    %750 = vmatpush2.bf16.msra.mxu0 %v561
    %751 = vmatprep.subr.bf16.mxu0 0
    %752 = vmatpush2.bf16.msra.mxu0 %v560
    %753 = vmatprep.subr.bf16.mxu0 0
    %754 = vmatpush2.bf16.msra.mxu0 %v559
    %755 = vmatprep.subr.bf16.mxu0 0
    %756 = vmatpush2.bf16.msra.mxu0 %v558
    %757 = vmatprep.subr.bf16.mxu0 0
    %758 = vmatpush2.bf16.msra.mxu0 %v557
    %759 = vmatprep.mubr.bf16.mxu0 %v250
    %760 = vmatmul.mubr.bf16.gmra.mxu0 %v249
    %v761 = vpop.f32.mrf.mxu0
    %v762 = vadd.f32 %v721, %v761
    %v763 = vpop.f32.mrf.mxu0
    %v764 = vpop.f32.mrf.mxu0
    %v765 = vadd.f32 %v724, %v764
    %v766 = vpop.f32.mrf.mxu0
    %767 = vdwg.mxu0
    %768 = vmatprep.subr.bf16.mxu0 0
    %769 = vmatpush1.bf16.msra.mxu0 %v572
    %770 = vmatprep.subr.bf16.mxu0 0
    %771 = vmatpush1.bf16.msra.mxu0 %v571
    %772 = vmatprep.subr.bf16.mxu0 0
    %773 = vmatpush1.bf16.msra.mxu0 %v570
    %774 = vmatprep.subr.bf16.mxu0 0
    %775 = vmatpush1.bf16.msra.mxu0 %v569
    %776 = vmatprep.subr.bf16.mxu0 0
    %777 = vmatpush1.bf16.msra.mxu0 %v568
    %778 = vmatprep.subr.bf16.mxu0 0
    %779 = vmatpush1.bf16.msra.mxu0 %v567
    %780 = vmatprep.subr.bf16.mxu0 0
    %781 = vmatpush1.bf16.msra.mxu0 %v566
    %782 = vmatprep.subr.bf16.mxu0 0
    %783 = vmatpush1.bf16.msra.mxu0 %v565
    %784 = vmatprep.subr.bf16.mxu0 0
    %785 = vmatpush2.bf16.msra.mxu0 %v580
    %786 = vmatprep.subr.bf16.mxu0 0
    %787 = vmatpush2.bf16.msra.mxu0 %v579
    %788 = vmatprep.subr.bf16.mxu0 0
    %789 = vmatpush2.bf16.msra.mxu0 %v578
    %790 = vmatprep.subr.bf16.mxu0 0
    %791 = vmatpush2.bf16.msra.mxu0 %v577
    %792 = vmatprep.subr.bf16.mxu0 0
    %793 = vmatpush2.bf16.msra.mxu0 %v576
    %794 = vmatprep.subr.bf16.mxu0 0
    %795 = vmatpush2.bf16.msra.mxu0 %v575
    %796 = vmatprep.subr.bf16.mxu0 0
    %797 = vmatpush2.bf16.msra.mxu0 %v574
    %798 = vmatprep.subr.bf16.mxu0 0
    %799 = vmatpush2.bf16.msra.mxu0 %v573
    %800 = vmatprep.mubr.bf16.mxu0 %v252
    %801 = vmatmul.mubr.bf16.gmra.mxu0 %v251
    %v802 = vpop.f32.mrf.mxu0
    %v803 = vadd.f32 %v762, %v802
    %v804 = vpop.f32.mrf.mxu0
    %v805 = vpop.f32.mrf.mxu0
    %v806 = vadd.f32 %v765, %v805
    %v807 = vpop.f32.mrf.mxu0
    %808 = vdwg.mxu0
    %v809 = vmax.f32 %v803, 0.0
    %v810 = vmax.f32 %v806, 0.0
    %811 = vst [vmem:[#allocation11] sm:$0xff] %v809
    %812 = vst [vmem:[#allocation11 + $0x8] sm:$0xff] %v810
    %v813 = vpack.c.bf16 %v810, %v809
    %v814 = vld [vmem:[#allocation7] sm:$0xff]
    %v815 = vld [vmem:[#allocation7 + $0x8] sm:$0xff]
    %v816 = vld [vmem:[#allocation7 + $0x10] sm:$0xff]
    %v817 = vld [vmem:[#allocation7 + $0x18] sm:$0xff]
    %v818 = vld [vmem:[#allocation7 + $0x20] sm:$0xff]
    %v819 = vld [vmem:[#allocation7 + $0x28] sm:$0xff]
    %v820 = vld [vmem:[#allocation7 + $0x30] sm:$0xff]
    %v821 = vld [vmem:[#allocation7 + $0x38] sm:$0xff]
    %v822 = vld [vmem:[#allocation7 + $0x40] sm:$0xff]
    %v823 = vld [vmem:[#allocation7 + $0x48] sm:$0xff]
    %v824 = vld [vmem:[#allocation7 + $0x50] sm:$0xff]
    %v825 = vld [vmem:[#allocation7 + $0x58] sm:$0xff]
    %v826 = vld [vmem:[#allocation7 + $0x60] sm:$0xff]
    %v827 = vld [vmem:[#allocation7 + $0x68] sm:$0xff]
    %v828 = vld [vmem:[#allocation7 + $0x70] sm:$0xff]
    %v829 = vld [vmem:[#allocation7 + $0x78] sm:$0xff]
    %v830 = vld [vmem:[#allocation7 + $0x80] sm:$0xff]
    %v831 = vld [vmem:[#allocation7 + $0x88] sm:$0xff]
    %v832 = vld [vmem:[#allocation7 + $0x90] sm:$0xff]
    %v833 = vld [vmem:[#allocation7 + $0x98] sm:$0xff]
    %v834 = vld [vmem:[#allocation7 + $0xa0] sm:$0xff]
    %v835 = vld [vmem:[#allocation7 + $0xa8] sm:$0xff]
    %v836 = vld [vmem:[#allocation7 + $0xb0] sm:$0xff]
    %v837 = vld [vmem:[#allocation7 + $0xb8] sm:$0xff]
    %v838 = vld [vmem:[#allocation7 + $0xc0] sm:$0xff]
    %v839 = vld [vmem:[#allocation7 + $0xc8] sm:$0xff]
    %v840 = vld [vmem:[#allocation7 + $0xd0] sm:$0xff]
    %v841 = vld [vmem:[#allocation7 + $0xd8] sm:$0xff]
    %v842 = vld [vmem:[#allocation7 + $0xe0] sm:$0xff]
    %v843 = vld [vmem:[#allocation7 + $0xe8] sm:$0xff]
    %v844 = vld [vmem:[#allocation7 + $0xf0] sm:$0xff]
    %v845 = vld [vmem:[#allocation7 + $0xf8] sm:$0xff]
    %v846 = vld [vmem:[#allocation7 + $0x100] sm:$0xff]
    %v847 = vld [vmem:[#allocation7 + $0x108] sm:$0xff]
    %v848 = vld [vmem:[#allocation7 + $0x110] sm:$0xff]
    %v849 = vld [vmem:[#allocation7 + $0x118] sm:$0xff]
    %v850 = vld [vmem:[#allocation7 + $0x120] sm:$0xff]
    %v851 = vld [vmem:[#allocation7 + $0x128] sm:$0xff]
    %v852 = vld [vmem:[#allocation7 + $0x130] sm:$0xff]
    %v853 = vld [vmem:[#allocation7 + $0x138] sm:$0xff]
    %v854 = vld [vmem:[#allocation7 + $0x140] sm:$0xff]
    %v855 = vld [vmem:[#allocation7 + $0x148] sm:$0xff]
    %v856 = vld [vmem:[#allocation7 + $0x150] sm:$0xff]
    %v857 = vld [vmem:[#allocation7 + $0x158] sm:$0xff]
    %v858 = vld [vmem:[#allocation7 + $0x160] sm:$0xff]
    %v859 = vld [vmem:[#allocation7 + $0x168] sm:$0xff]
    %v860 = vld [vmem:[#allocation7 + $0x170] sm:$0xff]
    %v861 = vld [vmem:[#allocation7 + $0x178] sm:$0xff]
    %v862 = vld [vmem:[#allocation7 + $0x180] sm:$0xff]
    %v863 = vld [vmem:[#allocation7 + $0x188] sm:$0xff]
    %v864 = vld [vmem:[#allocation7 + $0x190] sm:$0xff]
    %v865 = vld [vmem:[#allocation7 + $0x198] sm:$0xff]
    %v866 = vld [vmem:[#allocation7 + $0x1a0] sm:$0xff]
    %v867 = vld [vmem:[#allocation7 + $0x1a8] sm:$0xff]
    %v868 = vld [vmem:[#allocation7 + $0x1b0] sm:$0xff]
    %v869 = vld [vmem:[#allocation7 + $0x1b8] sm:$0xff]
    %v870 = vld [vmem:[#allocation7 + $0x1c0] sm:$0xff]
    %v871 = vld [vmem:[#allocation7 + $0x1c8] sm:$0xff]
    %v872 = vld [vmem:[#allocation7 + $0x1d0] sm:$0xff]
    %v873 = vld [vmem:[#allocation7 + $0x1d8] sm:$0xff]
    %v874 = vld [vmem:[#allocation7 + $0x1e0] sm:$0xff]
    %v875 = vld [vmem:[#allocation7 + $0x1e8] sm:$0xff]
    %v876 = vld [vmem:[#allocation7 + $0x1f0] sm:$0xff]
    %v877 = vld [vmem:[#allocation7 + $0x1f8] sm:$0xff]
    %v878 = vld [vmem:[#allocation8] sm:$0xff]
    %v880 = vlaneseq
    %v881 = vshrl.u32 %v880, 7
    %v882 = vsub.s32 0, %v881
    %v883 = vrot.slane %v878, %v882
    %v884 = vlaneseq
    %v885 = vshrl.u32 %v884, 7
    %v886 = vsub.s32 1, %v885
    %v887 = vrot.slane %v878, %v886
    %v888 = vlaneseq
    %v889 = vshrl.u32 %v888, 7
    %v890 = vsub.s32 2, %v889
    %v891 = vrot.slane %v878, %v890
    %v892 = vlaneseq
    %v893 = vshrl.u32 %v892, 7
    %v894 = vsub.s32 3, %v893
    %v895 = vrot.slane %v878, %v894
    %v896 = vlaneseq
    %v897 = vshrl.u32 %v896, 7
    %v898 = vsub.s32 4, %v897
    %v899 = vrot.slane %v878, %v898
    %v900 = vlaneseq
    %v901 = vshrl.u32 %v900, 7
    %v902 = vsub.s32 5, %v901
    %v903 = vrot.slane %v878, %v902
    %v904 = vlaneseq
    %v905 = vshrl.u32 %v904, 7
    %v906 = vsub.s32 6, %v905
    %v907 = vrot.slane %v878, %v906
    %v908 = vlaneseq
    %v909 = vshrl.u32 %v908, 7
    %v910 = vsub.s32 7, %v909
    %v911 = vrot.slane %v878, %v910
    %v984 = vunpack.c.l.b16 %v814
    %v985 = vunpack.c.h.b16 %v814
    %v986 = vunpack.c.l.b16 %v815
    %v987 = vunpack.c.h.b16 %v815
    %v988 = vunpack.c.l.b16 %v816
    %v989 = vunpack.c.h.b16 %v816
    %v990 = vunpack.c.l.b16 %v817
    %v991 = vunpack.c.h.b16 %v817
    %v992 = vunpack.c.l.b16 %v818
    %v993 = vunpack.c.h.b16 %v818
    %v994 = vunpack.c.l.b16 %v819
    %v995 = vunpack.c.h.b16 %v819
    %v996 = vunpack.c.l.b16 %v820
    %v997 = vunpack.c.h.b16 %v820
    %v998 = vunpack.c.l.b16 %v821
    %v999 = vunpack.c.h.b16 %v821
    %v1000 = vunpack.c.l.b16 %v822
    %v1001 = vunpack.c.h.b16 %v822
    %v1002 = vunpack.c.l.b16 %v823
    %v1003 = vunpack.c.h.b16 %v823
    %v1004 = vunpack.c.l.b16 %v824
    %v1005 = vunpack.c.h.b16 %v824
    %v1006 = vunpack.c.l.b16 %v825
    %v1007 = vunpack.c.h.b16 %v825
    %v1008 = vunpack.c.l.b16 %v826
    %v1009 = vunpack.c.h.b16 %v826
    %v1010 = vunpack.c.l.b16 %v827
    %v1011 = vunpack.c.h.b16 %v827
    %v1012 = vunpack.c.l.b16 %v828
    %v1013 = vunpack.c.h.b16 %v828
    %v1014 = vunpack.c.l.b16 %v829
    %v1015 = vunpack.c.h.b16 %v829
    %v1016 = vunpack.c.l.b16 %v830
    %v1017 = vunpack.c.h.b16 %v830
    %v1018 = vunpack.c.l.b16 %v831
    %v1019 = vunpack.c.h.b16 %v831
    %v1020 = vunpack.c.l.b16 %v832
    %v1021 = vunpack.c.h.b16 %v832
    %v1022 = vunpack.c.l.b16 %v833
    %v1023 = vunpack.c.h.b16 %v833
    %v1024 = vunpack.c.l.b16 %v834
    %v1025 = vunpack.c.h.b16 %v834
    %v1026 = vunpack.c.l.b16 %v835
    %v1027 = vunpack.c.h.b16 %v835
    %v1028 = vunpack.c.l.b16 %v836
    %v1029 = vunpack.c.h.b16 %v836
    %v1030 = vunpack.c.l.b16 %v837
    %v1031 = vunpack.c.h.b16 %v837
    %v1032 = vunpack.c.l.b16 %v838
    %v1033 = vunpack.c.h.b16 %v838
    %v1034 = vunpack.c.l.b16 %v839
    %v1035 = vunpack.c.h.b16 %v839
    %v1036 = vunpack.c.l.b16 %v840
    %v1037 = vunpack.c.h.b16 %v840
    %v1038 = vunpack.c.l.b16 %v841
    %v1039 = vunpack.c.h.b16 %v841
    %v1040 = vunpack.c.l.b16 %v842
    %v1041 = vunpack.c.h.b16 %v842
    %v1042 = vunpack.c.l.b16 %v843
    %v1043 = vunpack.c.h.b16 %v843
    %v1044 = vunpack.c.l.b16 %v844
    %v1045 = vunpack.c.h.b16 %v844
    %v1046 = vunpack.c.l.b16 %v845
    %v1047 = vunpack.c.h.b16 %v845
    %v1048 = vunpack.c.l.b16 %v846
    %v1049 = vunpack.c.h.b16 %v846
    %v1050 = vunpack.c.l.b16 %v847
    %v1051 = vunpack.c.h.b16 %v847
    %v1052 = vunpack.c.l.b16 %v848
    %v1053 = vunpack.c.h.b16 %v848
    %v1054 = vunpack.c.l.b16 %v849
    %v1055 = vunpack.c.h.b16 %v849
    %v1056 = vunpack.c.l.b16 %v850
    %v1057 = vunpack.c.h.b16 %v850
    %v1058 = vunpack.c.l.b16 %v851
    %v1059 = vunpack.c.h.b16 %v851
    %v1060 = vunpack.c.l.b16 %v852
    %v1061 = vunpack.c.h.b16 %v852
    %v1062 = vunpack.c.l.b16 %v853
    %v1063 = vunpack.c.h.b16 %v853
    %v1064 = vunpack.c.l.b16 %v854
    %v1065 = vunpack.c.h.b16 %v854
    %v1066 = vunpack.c.l.b16 %v855
    %v1067 = vunpack.c.h.b16 %v855
    %v1068 = vunpack.c.l.b16 %v856
    %v1069 = vunpack.c.h.b16 %v856
    %v1070 = vunpack.c.l.b16 %v857
    %v1071 = vunpack.c.h.b16 %v857
    %v1072 = vunpack.c.l.b16 %v858
    %v1073 = vunpack.c.h.b16 %v858
    %v1074 = vunpack.c.l.b16 %v859
    %v1075 = vunpack.c.h.b16 %v859
    %v1076 = vunpack.c.l.b16 %v860
    %v1077 = vunpack.c.h.b16 %v860
    %v1078 = vunpack.c.l.b16 %v861
    %v1079 = vunpack.c.h.b16 %v861
    %v1080 = vunpack.c.l.b16 %v862
    %v1081 = vunpack.c.h.b16 %v862
    %v1082 = vunpack.c.l.b16 %v863
    %v1083 = vunpack.c.h.b16 %v863
    %v1084 = vunpack.c.l.b16 %v864
    %v1085 = vunpack.c.h.b16 %v864
    %v1086 = vunpack.c.l.b16 %v865
    %v1087 = vunpack.c.h.b16 %v865
    %v1088 = vunpack.c.l.b16 %v866
    %v1089 = vunpack.c.h.b16 %v866
    %v1090 = vunpack.c.l.b16 %v867
    %v1091 = vunpack.c.h.b16 %v867
    %v1092 = vunpack.c.l.b16 %v868
    %v1093 = vunpack.c.h.b16 %v868
    %v1094 = vunpack.c.l.b16 %v869
    %v1095 = vunpack.c.h.b16 %v869
    %v1096 = vunpack.c.l.b16 %v870
    %v1097 = vunpack.c.h.b16 %v870
    %v1098 = vunpack.c.l.b16 %v871
    %v1099 = vunpack.c.h.b16 %v871
    %v1100 = vunpack.c.l.b16 %v872
    %v1101 = vunpack.c.h.b16 %v872
    %v1102 = vunpack.c.l.b16 %v873
    %v1103 = vunpack.c.h.b16 %v873
    %v1104 = vunpack.c.l.b16 %v874
    %v1105 = vunpack.c.h.b16 %v874
    %v1106 = vunpack.c.l.b16 %v875
    %v1107 = vunpack.c.h.b16 %v875
    %v1108 = vunpack.c.l.b16 %v876
    %v1109 = vunpack.c.h.b16 %v876
    %v1110 = vunpack.c.l.b16 %v877
    %v1111 = vunpack.c.h.b16 %v877
    %v1112 = vpack.c.b16 %v992, %v984
    %v1113 = vpack.c.b16 %v993, %v985
    %v1114 = vpack.c.b16 %v994, %v986
    %v1115 = vpack.c.b16 %v995, %v987
    %v1116 = vpack.c.b16 %v996, %v988
    %v1117 = vpack.c.b16 %v997, %v989
    %v1118 = vpack.c.b16 %v998, %v990
    %v1119 = vpack.c.b16 %v999, %v991
    %v1120 = vpack.c.b16 %v1008, %v1000
    %v1121 = vpack.c.b16 %v1009, %v1001
    %v1122 = vpack.c.b16 %v1010, %v1002
    %v1123 = vpack.c.b16 %v1011, %v1003
    %v1124 = vpack.c.b16 %v1012, %v1004
    %v1125 = vpack.c.b16 %v1013, %v1005
    %v1126 = vpack.c.b16 %v1014, %v1006
    %v1127 = vpack.c.b16 %v1015, %v1007
    %v1128 = vpack.c.b16 %v1024, %v1016
    %v1129 = vpack.c.b16 %v1025, %v1017
    %v1130 = vpack.c.b16 %v1026, %v1018
    %v1131 = vpack.c.b16 %v1027, %v1019
    %v1132 = vpack.c.b16 %v1028, %v1020
    %v1133 = vpack.c.b16 %v1029, %v1021
    %v1134 = vpack.c.b16 %v1030, %v1022
    %v1135 = vpack.c.b16 %v1031, %v1023
    %v1136 = vpack.c.b16 %v1040, %v1032
    %v1137 = vpack.c.b16 %v1041, %v1033
    %v1138 = vpack.c.b16 %v1042, %v1034
    %v1139 = vpack.c.b16 %v1043, %v1035
    %v1140 = vpack.c.b16 %v1044, %v1036
    %v1141 = vpack.c.b16 %v1045, %v1037
    %v1142 = vpack.c.b16 %v1046, %v1038
    %v1143 = vpack.c.b16 %v1047, %v1039
    %v1144 = vpack.c.b16 %v1056, %v1048
    %v1145 = vpack.c.b16 %v1057, %v1049
    %v1146 = vpack.c.b16 %v1058, %v1050
    %v1147 = vpack.c.b16 %v1059, %v1051
    %v1148 = vpack.c.b16 %v1060, %v1052
    %v1149 = vpack.c.b16 %v1061, %v1053
    %v1150 = vpack.c.b16 %v1062, %v1054
    %v1151 = vpack.c.b16 %v1063, %v1055
    %v1152 = vpack.c.b16 %v1072, %v1064
    %v1153 = vpack.c.b16 %v1073, %v1065
    %v1154 = vpack.c.b16 %v1074, %v1066
    %v1155 = vpack.c.b16 %v1075, %v1067
    %v1156 = vpack.c.b16 %v1076, %v1068
    %v1157 = vpack.c.b16 %v1077, %v1069
    %v1158 = vpack.c.b16 %v1078, %v1070
    %v1159 = vpack.c.b16 %v1079, %v1071
    %v1160 = vpack.c.b16 %v1088, %v1080
    %v1161 = vpack.c.b16 %v1089, %v1081
    %v1162 = vpack.c.b16 %v1090, %v1082
    %v1163 = vpack.c.b16 %v1091, %v1083
    %v1164 = vpack.c.b16 %v1092, %v1084
    %v1165 = vpack.c.b16 %v1093, %v1085
    %v1166 = vpack.c.b16 %v1094, %v1086
    %v1167 = vpack.c.b16 %v1095, %v1087
    %v1168 = vpack.c.b16 %v1104, %v1096
    %v1169 = vpack.c.b16 %v1105, %v1097
    %v1170 = vpack.c.b16 %v1106, %v1098
    %v1171 = vpack.c.b16 %v1107, %v1099
    %v1172 = vpack.c.b16 %v1108, %v1100
    %v1173 = vpack.c.b16 %v1109, %v1101
    %v1174 = vpack.c.b16 %v1110, %v1102
    %v1175 = vpack.c.b16 %v1111, %v1103
    %1240 = vmatprep.subr.bf16.mxu0 %v1169
    %1241 = vmatpush1.bf16.msra.mxu0 %v1168
    %1242 = vmatprep.subr.bf16.mxu0 %v1161
    %1243 = vmatpush1.bf16.msra.mxu0 %v1160
    %1244 = vmatprep.subr.bf16.mxu0 %v1153
    %1245 = vmatpush1.bf16.msra.mxu0 %v1152
    %1246 = vmatprep.subr.bf16.mxu0 %v1145
    %1247 = vmatpush1.bf16.msra.mxu0 %v1144
    %1248 = vmatprep.subr.bf16.mxu0 %v1137
    %1249 = vmatpush1.bf16.msra.mxu0 %v1136
    %1250 = vmatprep.subr.bf16.mxu0 %v1129
    %1251 = vmatpush1.bf16.msra.mxu0 %v1128
    %1252 = vmatprep.subr.bf16.mxu0 %v1121
    %1253 = vmatpush1.bf16.msra.mxu0 %v1120
    %1254 = vmatprep.subr.bf16.mxu0 %v1113
    %1255 = vmatpush1.bf16.msra.mxu0 %v1112
    %1256 = vmatprep.subr.bf16.mxu0 0
    %1257 = vmatpush2.bf16.msra.mxu0 0
    %1258 = vmatprep.subr.bf16.mxu0 0
    %1259 = vmatpush2.bf16.msra.mxu0 0
    %1260 = vmatprep.subr.bf16.mxu0 0
    %1261 = vmatpush2.bf16.msra.mxu0 0
    %1262 = vmatprep.subr.bf16.mxu0 0
    %1263 = vmatpush2.bf16.msra.mxu0 0
    %1264 = vmatprep.subr.bf16.mxu0 0
    %1265 = vmatpush2.bf16.msra.mxu0 0
    %1266 = vmatprep.subr.bf16.mxu0 0
    %1267 = vmatpush2.bf16.msra.mxu0 0
    %1268 = vmatprep.subr.bf16.mxu0 0
    %1269 = vmatpush2.bf16.msra.mxu0 0
    %1270 = vmatprep.subr.bf16.mxu0 0
    %1271 = vmatpush2.bf16.msra.mxu0 0
    %1272 = vmatprep.mubr.bf16.mxu0 0
    %1273 = vmatmul.mubr.bf16.gmra.mxu0 %v813
    %v1274 = vpop.f32.mrf.mxu0
    %v1275 = vadd.f32 %v883, %v1274
    %v1276 = vpop.f32.mrf.mxu0
    %v1277 = vadd.f32 %v887, %v1276
    %v1278 = vpop.f32.mrf.mxu0
    %v1279 = vadd.f32 %v883, %v1278
    %v1280 = vpop.f32.mrf.mxu0
    %v1281 = vadd.f32 %v887, %v1280
    %1282 = vdwg.mxu0
    %1283 = vmatprep.subr.bf16.mxu0 %v1171
    %1284 = vmatpush1.bf16.msra.mxu0 %v1170
    %1285 = vmatprep.subr.bf16.mxu0 %v1163
    %1286 = vmatpush1.bf16.msra.mxu0 %v1162
    %1287 = vmatprep.subr.bf16.mxu0 %v1155
    %1288 = vmatpush1.bf16.msra.mxu0 %v1154
    %1289 = vmatprep.subr.bf16.mxu0 %v1147
    %1290 = vmatpush1.bf16.msra.mxu0 %v1146
    %1291 = vmatprep.subr.bf16.mxu0 %v1139
    %1292 = vmatpush1.bf16.msra.mxu0 %v1138
    %1293 = vmatprep.subr.bf16.mxu0 %v1131
    %1294 = vmatpush1.bf16.msra.mxu0 %v1130
    %1295 = vmatprep.subr.bf16.mxu0 %v1123
    %1296 = vmatpush1.bf16.msra.mxu0 %v1122
    %1297 = vmatprep.subr.bf16.mxu0 %v1115
    %1298 = vmatpush1.bf16.msra.mxu0 %v1114
    %1299 = vmatprep.subr.bf16.mxu0 0
    %1300 = vmatpush2.bf16.msra.mxu0 0
    %1301 = vmatprep.subr.bf16.mxu0 0
    %1302 = vmatpush2.bf16.msra.mxu0 0
    %1303 = vmatprep.subr.bf16.mxu0 0
    %1304 = vmatpush2.bf16.msra.mxu0 0
    %1305 = vmatprep.subr.bf16.mxu0 0
    %1306 = vmatpush2.bf16.msra.mxu0 0
    %1307 = vmatprep.subr.bf16.mxu0 0
    %1308 = vmatpush2.bf16.msra.mxu0 0
    %1309 = vmatprep.subr.bf16.mxu0 0
    %1310 = vmatpush2.bf16.msra.mxu0 0
    %1311 = vmatprep.subr.bf16.mxu0 0
    %1312 = vmatpush2.bf16.msra.mxu0 0
    %1313 = vmatprep.subr.bf16.mxu0 0
    %1314 = vmatpush2.bf16.msra.mxu0 0
    %1315 = vmatprep.mubr.bf16.mxu0 0
    %1316 = vmatmul.mubr.bf16.gmra.mxu0 %v813
    %v1317 = vpop.f32.mrf.mxu0
    %v1318 = vadd.f32 %v891, %v1317
    %v1319 = vpop.f32.mrf.mxu0
    %v1320 = vadd.f32 %v895, %v1319
    %v1321 = vpop.f32.mrf.mxu0
    %v1322 = vadd.f32 %v891, %v1321
    %v1323 = vpop.f32.mrf.mxu0
    %v1324 = vadd.f32 %v895, %v1323
    %1325 = vdwg.mxu0
    %1326 = vmatprep.subr.bf16.mxu0 %v1173
    %1327 = vmatpush1.bf16.msra.mxu0 %v1172
    %1328 = vmatprep.subr.bf16.mxu0 %v1165
    %1329 = vmatpush1.bf16.msra.mxu0 %v1164
    %1330 = vmatprep.subr.bf16.mxu0 %v1157
    %1331 = vmatpush1.bf16.msra.mxu0 %v1156
    %1332 = vmatprep.subr.bf16.mxu0 %v1149
    %1333 = vmatpush1.bf16.msra.mxu0 %v1148
    %1334 = vmatprep.subr.bf16.mxu0 %v1141
    %1335 = vmatpush1.bf16.msra.mxu0 %v1140
    %1336 = vmatprep.subr.bf16.mxu0 %v1133
    %1337 = vmatpush1.bf16.msra.mxu0 %v1132
    %1338 = vmatprep.subr.bf16.mxu0 %v1125
    %1339 = vmatpush1.bf16.msra.mxu0 %v1124
    %1340 = vmatprep.subr.bf16.mxu0 %v1117
    %1341 = vmatpush1.bf16.msra.mxu0 %v1116
    %1342 = vmatprep.subr.bf16.mxu0 0
    %1343 = vmatpush2.bf16.msra.mxu0 0
    %1344 = vmatprep.subr.bf16.mxu0 0
    %1345 = vmatpush2.bf16.msra.mxu0 0
    %1346 = vmatprep.subr.bf16.mxu0 0
    %1347 = vmatpush2.bf16.msra.mxu0 0
    %1348 = vmatprep.subr.bf16.mxu0 0
    %1349 = vmatpush2.bf16.msra.mxu0 0
    %1350 = vmatprep.subr.bf16.mxu0 0
    %1351 = vmatpush2.bf16.msra.mxu0 0
    %1352 = vmatprep.subr.bf16.mxu0 0
    %1353 = vmatpush2.bf16.msra.mxu0 0
    %1354 = vmatprep.subr.bf16.mxu0 0
    %1355 = vmatpush2.bf16.msra.mxu0 0
    %1356 = vmatprep.subr.bf16.mxu0 0
    %1357 = vmatpush2.bf16.msra.mxu0 0
    %1358 = vmatprep.mubr.bf16.mxu0 0
    %1359 = vmatmul.mubr.bf16.gmra.mxu0 %v813
    %v1360 = vpop.f32.mrf.mxu0
    %v1361 = vadd.f32 %v899, %v1360
    %v1362 = vpop.f32.mrf.mxu0
    %v1363 = vadd.f32 %v903, %v1362
    %v1364 = vpop.f32.mrf.mxu0
    %v1365 = vadd.f32 %v899, %v1364
    %v1366 = vpop.f32.mrf.mxu0
    %v1367 = vadd.f32 %v903, %v1366
    %1368 = vdwg.mxu0
    %1369 = vmatprep.subr.bf16.mxu0 %v1175
    %1370 = vmatpush1.bf16.msra.mxu0 %v1174
    %1371 = vmatprep.subr.bf16.mxu0 %v1167
    %1372 = vmatpush1.bf16.msra.mxu0 %v1166
    %1373 = vmatprep.subr.bf16.mxu0 %v1159
    %1374 = vmatpush1.bf16.msra.mxu0 %v1158
    %1375 = vmatprep.subr.bf16.mxu0 %v1151
    %1376 = vmatpush1.bf16.msra.mxu0 %v1150
    %1377 = vmatprep.subr.bf16.mxu0 %v1143
    %1378 = vmatpush1.bf16.msra.mxu0 %v1142
    %1379 = vmatprep.subr.bf16.mxu0 %v1135
    %1380 = vmatpush1.bf16.msra.mxu0 %v1134
    %1381 = vmatprep.subr.bf16.mxu0 %v1127
    %1382 = vmatpush1.bf16.msra.mxu0 %v1126
    %1383 = vmatprep.subr.bf16.mxu0 %v1119
    %1384 = vmatpush1.bf16.msra.mxu0 %v1118
    %1385 = vmatprep.subr.bf16.mxu0 0
    %1386 = vmatpush2.bf16.msra.mxu0 0
    %1387 = vmatprep.subr.bf16.mxu0 0
    %1388 = vmatpush2.bf16.msra.mxu0 0
    %1389 = vmatprep.subr.bf16.mxu0 0
    %1390 = vmatpush2.bf16.msra.mxu0 0
    %1391 = vmatprep.subr.bf16.mxu0 0
    %1392 = vmatpush2.bf16.msra.mxu0 0
    %1393 = vmatprep.subr.bf16.mxu0 0
    %1394 = vmatpush2.bf16.msra.mxu0 0
    %1395 = vmatprep.subr.bf16.mxu0 0
    %1396 = vmatpush2.bf16.msra.mxu0 0
    %1397 = vmatprep.subr.bf16.mxu0 0
    %1398 = vmatpush2.bf16.msra.mxu0 0
    %1399 = vmatprep.subr.bf16.mxu0 0
    %1400 = vmatpush2.bf16.msra.mxu0 0
    %1401 = vmatprep.mubr.bf16.mxu0 0
    %1402 = vmatmul.mubr.bf16.gmra.mxu0 %v813
    %v1403 = vpop.f32.mrf.mxu0
    %v1404 = vadd.f32 %v907, %v1403
    %v1405 = vpop.f32.mrf.mxu0
    %v1406 = vadd.f32 %v911, %v1405
    %v1407 = vpop.f32.mrf.mxu0
    %v1408 = vadd.f32 %v907, %v1407
    %v1409 = vpop.f32.mrf.mxu0
    %v1410 = vadd.f32 %v911, %v1409
    %1411 = vdwg.mxu0
    %1412 = vst [vmem:[#allocation10] sm:$0xff] %v1275
    %1413 = vst [vmem:[#allocation10 + $0x8] sm:$0xff] %v1277
    %1414 = vst [vmem:[#allocation10 + $0x10] sm:$0xff] %v1318
    %1415 = vst [vmem:[#allocation10 + $0x18] sm:$0xff] %v1320
    %1416 = vst [vmem:[#allocation10 + $0x20] sm:$0xff] %v1361
    %1417 = vst [vmem:[#allocation10 + $0x28] sm:$0xff] %v1363
    %1418 = vst [vmem:[#allocation10 + $0x30] sm:$0xff] %v1404
    %1419 = vst [vmem:[#allocation10 + $0x38] sm:$0xff] %v1406
    %1420 = vst [vmem:[#allocation10 + $0x40] sm:$0xff] %v1279
    %1421 = vst [vmem:[#allocation10 + $0x48] sm:$0xff] %v1281
    %1422 = vst [vmem:[#allocation10 + $0x50] sm:$0xff] %v1322
    %1423 = vst [vmem:[#allocation10 + $0x58] sm:$0xff] %v1324
    %1424 = vst [vmem:[#allocation10 + $0x60] sm:$0xff] %v1365
    %1425 = vst [vmem:[#allocation10 + $0x68] sm:$0xff] %v1367
    %1426 = vst [vmem:[#allocation10 + $0x70] sm:$0xff] %v1408
    %1427 = vst [vmem:[#allocation10 + $0x78] sm:$0xff] %v1410
    // Predicated region
    $region38: #{tpu_custom_call.1} parent=1 // pred_check
      _
    $region39: #{tpu_custom_call.1} parent=1 // pred_check_branch
      %1429 = sbr.rel (0) target = $region41
    $region40: #{tpu_custom_call.1} parent=1 // pred_region
      %s1431 = ssub.s32 2048, 2048
      %1432 = vsyncadd [#allocation4], %s1431
      %s1433 = sshll.u32 [#allocation10], 4
      %s1434 = int_to_ptr.vmem [resolvable:$true] %s1433
      %1439 = dma.vmem_to_hbm [thread:$0]  %s1434, 2048, %s5, [#allocation4], 1024, 1024, 64
    $region41: #{tpu_custom_call.1} parent=1 // pred_fallthru
      _
    // Predicated region
    $region42: #{tpu_custom_call.1} parent=1 // pred_check
      _
    $region43: #{tpu_custom_call.1} parent=1 // pred_check_branch
      %1441 = sbr.rel (0) target = $region45
    $region44: #{tpu_custom_call.1} parent=1 // pred_region
      %s1443 = ssub.s32 256, 256
      %1444 = vsyncadd [#allocation12], %s1443
      %s1445 = sshll.u32 [#allocation11], 4
      %s1446 = int_to_ptr.vmem [resolvable:$true] %s1445
      %1451 = dma.vmem_to_hbm [thread:$0]  %s1446, 256, %s6, [#allocation12], 128, 128, 8
    $region45: #{tpu_custom_call.1} parent=1 // pred_fallthru
      _
    // Predicated region
    $region46: #{tpu_custom_call.1} parent=1 // pred_check
      _
    $region47: #{tpu_custom_call.1} parent=1 // pred_check_branch
      %1453 = sbr.rel (0) target = $region49
    $region48: #{tpu_custom_call.1} parent=1 // pred_region
      %1454 = dma.done [#allocation4], 2048
    $region49: #{tpu_custom_call.1} parent=1 // pred_fallthru
      _
    // Predicated region
    $region50: #{tpu_custom_call.1} parent=1 // pred_check
      _
    $region51: #{tpu_custom_call.1} parent=1 // pred_check_branch
      %1456 = sbr.rel (0) target = $region53
    $region52: #{tpu_custom_call.1} parent=1 // pred_region
      %1457 = dma.done [#allocation12], 256
    $region53: #{tpu_custom_call.1} parent=1 // pred_fallthru
      _
    %1458 = vsyncpa [#allocation3], 1
    %1459 = vsyncpa [#allocation6], 1
    %1460 = vsyncpa [#allocation9], 1
    %1461 = vsyncpa [#allocation4], 1
    %1462 = vsyncpa [#allocation12], 1

</llo_original>
